<compile_context>
chip_gen: v6e
topology: v6e:2x2x1
jax: 0.10.0
libtpu: 0.0.40
codegen_flags: <defaults>
</compile_context>

<pallas_src>
import functools

import jax
import jax.numpy as jnp
from jax import lax
from jax.experimental import pallas as pl
from jax.experimental.pallas import tpu as pltpu


def _round_up(x, m):
    return (x + m - 1) // m * m


def _layernorm_rows(x, gamma, beta, eps=1e-5):
    """LayerNorm over the last dim of a (TILE, D) f32 block (biased variance)."""
    mean = jnp.mean(x, axis=-1, keepdims=True)
    xc = x - mean
    var = jnp.mean(xc * xc, axis=-1, keepdims=True)     # two-pass, no cancellation
    inv = lax.rsqrt(var + eps)
    return xc * inv * gamma + beta


# --------------------------------------------------------------------------
# Path 1: HBM-resident token table, double-buffered per-row DMA gather.
# --------------------------------------------------------------------------
def _dma_gather_kernel(ids_ref,      # SMEM (N,) int32  - scalar-prefetched token ids
                       pos_seg_ref,  # VMEM (S, D) f32  - resident pos-enc + segment table
                       gamma_ref,    # VMEM (1, D) f32
                       beta_ref,     # VMEM (1, D) f32
                       tok_hbm,      # HBM  (V, D)      - token table (native dtype)
                       out_ref,      # VMEM (TILE, D) f32
                       gbuf,         # VMEM (2*TILE, D) scratch (native dtype), 2 halves
                       sems,         # DMA semaphores (2,) - one per buffer half
                       *, tile, tiles_per_batch):
    b = pl.program_id(0)
    j = pl.program_id(1)
    slot = j % 2

    def issue_tile(tile_idx, dst_slot):
        # One (1, D) row DMA per token; all copies of one tile share a single
        # semaphore from the 2-entry bank and stay in flight together.
        base = (b * tiles_per_batch + tile_idx) * tile
        dst0 = dst_slot * tile
        for r in range(tile):                       # tile is a compile-time constant (<=128)
            tok_id = ids_ref[base + r]
            pltpu.make_async_copy(
                tok_hbm.at[pl.ds(tok_id, 1), :],
                gbuf.at[pl.ds(dst0 + r, 1), :],
                sems.at[dst_slot],
            ).start()

    # Prime the pipeline with the current tile on the very first step of this batch.
    @pl.when(j == 0)
    def _prime():
        issue_tile(0, 0)

    # Cross-tile prefetch: issue tile j+1's gather into the other buffer half
    # before waiting on / computing tile j (tile axis is "arbitrary").
    @pl.when(j + 1 < tiles_per_batch)
    def _prefetch_next():
        issue_tile(j + 1, 1 - slot)

    # Wait for the current tile: one wait per issued (1, D) copy on the shared
    # semaphore (small bank instead of a per-row semaphore array).
    for _ in range(tile):
        pltpu.make_async_copy(
            tok_hbm.at[pl.ds(0, 1), :],
            gbuf.at[pl.ds(0, 1), :],
            sems.at[slot],
        ).wait()

    row0 = pl.multiple_of(slot * tile, tile)
    x_tok = gbuf[pl.ds(row0, tile), :].astype(jnp.float32)
    p0 = pl.multiple_of(j * tile, tile)
    x = x_tok + pos_seg_ref[pl.ds(p0, tile), :]
    out_ref[...] = _layernorm_rows(x, gamma_ref[...], beta_ref[...]).astype(out_ref.dtype)


# --------------------------------------------------------------------------
# Path 2: small token table, kept VMEM-resident; in-VMEM dynamic row gather.
# --------------------------------------------------------------------------
def _vmem_gather_kernel(ids_ref,      # SMEM (N,) int32
                        pos_seg_ref,  # VMEM (S, D) f32 - resident
                        gamma_ref,    # VMEM (1, D) f32
                        beta_ref,     # VMEM (1, D) f32
                        tok_ref,      # VMEM (V, D)     - resident token table
                        out_ref,      # VMEM (TILE, D) f32
                        rowbuf,       # VMEM (TILE, D) scratch (native dtype)
                        *, tile, tiles_per_batch):
    b = pl.program_id(0)
    j = pl.program_id(1)
    base = (b * tiles_per_batch + j) * tile
    for r in range(tile):
        tok_id = ids_ref[base + r]
        rowbuf[pl.ds(r, 1), :] = tok_ref[pl.ds(tok_id, 1), :]
    p0 = pl.multiple_of(j * tile, tile)
    x = rowbuf[...].astype(jnp.float32) + pos_seg_ref[pl.ds(p0, tile), :]
    out_ref[...] = _layernorm_rows(x, gamma_ref[...], beta_ref[...]).astype(out_ref.dtype)


# --------------------------------------------------------------------------
# Wrapper
# --------------------------------------------------------------------------
def _pick_row_tile(sentence_len, cap=128):
    for cand in (128, 64, 32, 16, 8):
        if cand <= cap and sentence_len % cand == 0:
            return cand
    raise ValueError("sentence length must be a multiple of 8 for this kernel")


def _pos_seg_table(S, D, seg_tab):
    # Sinusoidal PE matching the reference: angle[s, d] = s / 10000 ** (2*d/D);
    # sin on even columns, cos on odd columns (raw dimension index).
    pos = jnp.arange(S, dtype=jnp.float32)[:, None]
    d_f = jnp.arange(D, dtype=jnp.float32)[None, :]
    angle = pos / jnp.power(10000.0, 2.0 * d_f / D)
    d_i = jnp.arange(D, dtype=jnp.int32)[None, :]
    pos_enc = jnp.where((d_i % 2) == 0, jnp.sin(angle), jnp.cos(angle))      # (S, D)
    seg_is_one = (jnp.arange(S) >= (S // 2 + 1))[:, None]                    # (S, 1)
    seg_tab = seg_tab.astype(jnp.float32)
    seg_emb = jnp.where(seg_is_one, seg_tab[1][None, :], seg_tab[0][None, :])
    return (pos_enc + seg_emb).astype(jnp.float32)                           # (S, D)


def joint_embedding(ids, tok_tab, seg_tab, gamma, beta, *,
                    tile_rows=None, force_hbm_gather=False,
                    vmem_table_budget_bytes=16 * 1024 * 1024):
    B, S = ids.shape
    V, D = tok_tab.shape
    N = B * S

    TILE = _pick_row_tile(S) if tile_rows is None else int(tile_rows)
    if S % TILE != 0 or TILE % 8 != 0 or TILE > 256:
        raise ValueError("tile_rows must divide S, be a multiple of 8 and <= 256")
    NT = S // TILE

    # Token table stays in its native dtype (bf16 tables halve the gather
    # traffic); upcast to f32 happens inside the kernel.
    tok_dt = tok_tab.dtype
    tok_isz = jnp.dtype(tok_dt).itemsize

    pos_seg = _pos_seg_table(S, D, seg_tab)                                  # (S, D) f32
    ids_flat = ids.reshape(N).astype(jnp.int32)
    gamma2 = gamma.reshape(1, D).astype(jnp.float32)
    beta2 = beta.reshape(1, D).astype(jnp.float32)

    # --- VMEM budgeting (v7x has 64 MiB physical / 32 MiB default scoped). ---
    lanes = _round_up(D, 128)
    table_vmem_bytes = _round_up(V, 8) * lanes * tok_isz
    use_resident_table = (not force_hbm_gather) and table_vmem_bytes <= vmem_table_budget_bytes

    pos_seg_bytes = _round_up(S, 8) * lanes * 4
    est = pos_seg_bytes + 2 * (TILE * lanes * 4) + 2 * TILE * lanes * tok_isz + 2 * lanes * 4
    if use_resident_table:
        est += table_vmem_bytes
    vmem_limit = int(min(64 * 2 ** 20, max(8 * 2 ** 20, 2 * est)))

    common_in_specs = [
        pl.BlockSpec((S, D), lambda b, j, _ids: (0, 0)),    # pos+seg table, VMEM-resident
        pl.BlockSpec((1, D), lambda b, j, _ids: (0, 0)),    # gamma, resident
        pl.BlockSpec((1, D), lambda b, j, _ids: (0, 0)),    # beta, resident
    ]
    out_spec = pl.BlockSpec((TILE, D), lambda b, j, _ids: (b * NT + j, 0))

    if use_resident_table:
        kernel = functools.partial(_vmem_gather_kernel, tile=TILE, tiles_per_batch=NT)
        in_specs = common_in_specs + [pl.BlockSpec((V, D), lambda b, j, _ids: (0, 0))]
        scratch = [pltpu.VMEM((TILE, D), tok_dt)]
    else:
        kernel = functools.partial(_dma_gather_kernel, tile=TILE, tiles_per_batch=NT)
        in_specs = common_in_specs + [pl.BlockSpec(memory_space=pl.ANY)]     # table in HBM
        scratch = [pltpu.VMEM((2 * TILE, D), tok_dt),        # double-buffered gather rows
                   pltpu.SemaphoreType.DMA((2,))]             # one sem per buffer half

    grid_spec = pltpu.PrefetchScalarGridSpec(
        num_scalar_prefetch=1,
        grid=(B, NT),                                         # (parallel, arbitrary)
        in_specs=in_specs,
        out_specs=out_spec,
        scratch_shapes=scratch,
    )

    out_flat = pl.pallas_call(
        kernel,
        out_shape=jax.ShapeDtypeStruct((N, D), jnp.float32),
        grid_spec=grid_spec,
        compiler_params=pltpu.CompilerParams(
            dimension_semantics=("parallel", "arbitrary"),
            vmem_limit_bytes=vmem_limit,
        ),
    )(ids_flat, pos_seg, gamma2, beta2, tok_tab)

    return out_flat.reshape(B, S, D)


# --------------------------------------------------------------------------
# Pure-JAX reference (same intended semantics as the PyTorch module)
# --------------------------------------------------------------------------
def _reference(ids, tok_tab, seg_tab, gamma, beta):
    B, S = ids.shape
    V, D = tok_tab.shape
    tok_emb = tok_tab.astype(jnp.float32)[ids]                               # (B, S, D)
    seg_ids = (jnp.arange(S) >= (S // 2 + 1)).astype(jnp.int32)              # (S,)
    seg_emb = seg_tab.astype(jnp.float32)[seg_ids][None, :, :]               # (1, S, D)
    pos = jnp.arange(S, dtype=jnp.float32)[:, None]
    d_f = jnp.arange(D, dtype=jnp.float32)[None, :]
    angle = pos / jnp.power(10000.0, 2.0 * d_f / D)
    d_i = jnp.arange(D, dtype=jnp.int32)[None, :]
    pos_enc = jnp.where((d_i % 2) == 0, jnp.sin(angle), jnp.cos(angle))
    x = tok_emb + seg_emb + pos_enc[None, :, :]
    mean = jnp.mean(x, axis=-1, keepdims=True)
    var = jnp.mean(jnp.square(x - mean), axis=-1, keepdims=True)
    return (x - mean) * lax.rsqrt(var + 1e-5) * gamma + beta


if __name__ == "__main__":
    # Small shapes implied by the forward: (batch, sentence_len) int token ids.
    B, S = 2, 16
    V, D = 64, 32          # vocab_size, embedding size

    key = jax.random.PRNGKey(0)
    k_ids, k_tok, k_seg, k_g, k_b = jax.random.split(key, 5)

    ids = jax.random.randint(k_ids, (B, S), 0, V, dtype=jnp.int32)
    tok_tab = jax.random.normal(k_tok, (V, D), dtype=jnp.float32)
    seg_tab = jax.random.normal(k_seg, (V, D), dtype=jnp.float32)
    gamma = 1.0 + 0.1 * jax.random.normal(k_g, (D,), dtype=jnp.float32)
    beta = 0.1 * jax.random.normal(k_b, (D,), dtype=jnp.float32)

    ref = _reference(ids, tok_tab, seg_tab, gamma, beta)

    # Fast path: the tiny table fits in VMEM -> resident-table in-VMEM gather.
    out_fast = joint_embedding(ids, tok_tab, seg_tab, gamma, beta)
    jax.block_until_ready(out_fast)
    assert out_fast.shape == (B, S, D) and out_fast.dtype == jnp.float32
    err_fast = float(jnp.max(jnp.abs(out_fast - ref)))
    assert jnp.allclose(out_fast, ref, atol=1e-3, rtol=1e-3), err_fast

    # HBM-gather path: force it, with TILE=8 so each sequence has 2 tiles and
    # the cross-tile double-buffered prefetch is actually exercised.
    out_dma = joint_embedding(ids, tok_tab, seg_tab, gamma, beta,
                              tile_rows=8, force_hbm_gather=True)
    jax.block_until_ready(out_dma)
    err_dma = float(jnp.max(jnp.abs(out_dma - ref)))
    assert jnp.allclose(out_dma, ref, atol=1e-3, rtol=1e-3), err_dma

    print("KERNEL_OK")
</pallas_src>

<mosaic_0001>
module attributes {stable_mosaic.version = 11 : i64} {
  func.func @_vmem_gather_kernel(%arg0: i32, %arg1: i32, %arg2: memref<32xi32, #tpu.memory_space<smem>>, %arg3: memref<16x32xf32, #tpu.memory_space<vmem>>, %arg4: memref<1x32xf32, #tpu.memory_space<vmem>>, %arg5: memref<1x32xf32, #tpu.memory_space<vmem>>, %arg6: memref<64x32xf32, #tpu.memory_space<vmem>>, %arg7: memref<16x32xf32, #tpu.memory_space<vmem>>, %arg8: memref<16x32xf32, #tpu.memory_space<vmem>>) attributes {dimension_semantics = [#tpu.dimension_semantics<parallel>, #tpu.dimension_semantics<arbitrary>], iteration_bounds = array<i64: 2, 1>, scalar_prefetch = 1 : i64, scratch_operands = 1 : i64, tpu.core_type = #tpu.core_type<tc>, window_params = [{pipeline_mode = #tpu.pipeline_mode<synchronous>, transform_indices = @transform_0, window_bounds = array<i64: 16, 32>}, {pipeline_mode = #tpu.pipeline_mode<synchronous>, transform_indices = @transform_1, window_bounds = array<i64: 1, 32>}, {pipeline_mode = #tpu.pipeline_mode<synchronous>, transform_indices = @transform_2, window_bounds = array<i64: 1, 32>}, {pipeline_mode = #tpu.pipeline_mode<synchronous>, transform_indices = @transform_3, window_bounds = array<i64: 64, 32>}, {transform_indices = @transform_4, window_bounds = array<i64: 16, 32>}]} {
    %c1_i32 = arith.constant 1 : i32
    %0 = arith.muli %arg0, %c1_i32 : i32
    %1 = arith.addi %0, %arg1 : i32
    %c16_i32 = arith.constant 16 : i32
    %2 = arith.muli %1, %c16_i32 : i32
    %c0_i32 = arith.constant 0 : i32
    %3 = arith.addi %2, %c0_i32 : i32
    %4 = arith.index_cast %3 : i32 to index
    %5 = memref.load %arg2[%4] : memref<32xi32, #tpu.memory_space<smem>>
    %6 = arith.index_cast %5 : i32 to index
    %c0 = arith.constant 0 : index
    %7 = vector.load %arg6[%6, %c0] : memref<64x32xf32, #tpu.memory_space<vmem>>, vector<1x32xf32>
    %c0_0 = arith.constant 0 : index
    %c0_1 = arith.constant 0 : index
    %8 = vector.load %arg8[%c0_0, %c0_1] : memref<16x32xf32, #tpu.memory_space<vmem>>, vector<1x32xf32>
    tpu.vector_store %arg8[%c0_0, %c0_1], %7 {strides = array<i32>} : memref<16x32xf32, #tpu.memory_space<vmem>>, vector<1x32xf32>,
    %c1_i32_2 = arith.constant 1 : i32
    %9 = arith.addi %2, %c1_i32_2 : i32
    %10 = arith.index_cast %9 : i32 to index
    %11 = memref.load %arg2[%10] : memref<32xi32, #tpu.memory_space<smem>>
    %12 = arith.index_cast %11 : i32 to index
    %c0_3 = arith.constant 0 : index
    %13 = vector.load %arg6[%12, %c0_3] : memref<64x32xf32, #tpu.memory_space<vmem>>, vector<1x32xf32>
    %c1 = arith.constant 1 : index
    %c0_4 = arith.constant 0 : index
    %14 = vector.load %arg8[%c1, %c0_4] : memref<16x32xf32, #tpu.memory_space<vmem>>, vector<1x32xf32>
    tpu.vector_store %arg8[%c1, %c0_4], %13 {strides = array<i32>} : memref<16x32xf32, #tpu.memory_space<vmem>>, vector<1x32xf32>,
    %c2_i32 = arith.constant 2 : i32
    %15 = arith.addi %2, %c2_i32 : i32
    %16 = arith.index_cast %15 : i32 to index
    %17 = memref.load %arg2[%16] : memref<32xi32, #tpu.memory_space<smem>>
    %18 = arith.index_cast %17 : i32 to index
    %c0_5 = arith.constant 0 : index
    %19 = vector.load %arg6[%18, %c0_5] : memref<64x32xf32, #tpu.memory_space<vmem>>, vector<1x32xf32>
    %c2 = arith.constant 2 : index
    %c0_6 = arith.constant 0 : index
    %20 = vector.load %arg8[%c2, %c0_6] : memref<16x32xf32, #tpu.memory_space<vmem>>, vector<1x32xf32>
    tpu.vector_store %arg8[%c2, %c0_6], %19 {strides = array<i32>} : memref<16x32xf32, #tpu.memory_space<vmem>>, vector<1x32xf32>,
    %c3_i32 = arith.constant 3 : i32
    %21 = arith.addi %2, %c3_i32 : i32
    %22 = arith.index_cast %21 : i32 to index
    %23 = memref.load %arg2[%22] : memref<32xi32, #tpu.memory_space<smem>>
    %24 = arith.index_cast %23 : i32 to index
    %c0_7 = arith.constant 0 : index
    %25 = vector.load %arg6[%24, %c0_7] : memref<64x32xf32, #tpu.memory_space<vmem>>, vector<1x32xf32>
    %c3 = arith.constant 3 : index
    %c0_8 = arith.constant 0 : index
    %26 = vector.load %arg8[%c3, %c0_8] : memref<16x32xf32, #tpu.memory_space<vmem>>, vector<1x32xf32>
    tpu.vector_store %arg8[%c3, %c0_8], %25 {strides = array<i32>} : memref<16x32xf32, #tpu.memory_space<vmem>>, vector<1x32xf32>,
    %c4_i32 = arith.constant 4 : i32
    %27 = arith.addi %2, %c4_i32 : i32
    %28 = arith.index_cast %27 : i32 to index
    %29 = memref.load %arg2[%28] : memref<32xi32, #tpu.memory_space<smem>>
    %30 = arith.index_cast %29 : i32 to index
    %c0_9 = arith.constant 0 : index
    %31 = vector.load %arg6[%30, %c0_9] : memref<64x32xf32, #tpu.memory_space<vmem>>, vector<1x32xf32>
    %c4 = arith.constant 4 : index
    %c0_10 = arith.constant 0 : index
    %32 = vector.load %arg8[%c4, %c0_10] : memref<16x32xf32, #tpu.memory_space<vmem>>, vector<1x32xf32>
    tpu.vector_store %arg8[%c4, %c0_10], %31 {strides = array<i32>} : memref<16x32xf32, #tpu.memory_space<vmem>>, vector<1x32xf32>,
    %c5_i32 = arith.constant 5 : i32
    %33 = arith.addi %2, %c5_i32 : i32
    %34 = arith.index_cast %33 : i32 to index
    %35 = memref.load %arg2[%34] : memref<32xi32, #tpu.memory_space<smem>>
    %36 = arith.index_cast %35 : i32 to index
    %c0_11 = arith.constant 0 : index
    %37 = vector.load %arg6[%36, %c0_11] : memref<64x32xf32, #tpu.memory_space<vmem>>, vector<1x32xf32>
    %c5 = arith.constant 5 : index
    %c0_12 = arith.constant 0 : index
    %38 = vector.load %arg8[%c5, %c0_12] : memref<16x32xf32, #tpu.memory_space<vmem>>, vector<1x32xf32>
    tpu.vector_store %arg8[%c5, %c0_12], %37 {strides = array<i32>} : memref<16x32xf32, #tpu.memory_space<vmem>>, vector<1x32xf32>,
    %c6_i32 = arith.constant 6 : i32
    %39 = arith.addi %2, %c6_i32 : i32
    %40 = arith.index_cast %39 : i32 to index
    %41 = memref.load %arg2[%40] : memref<32xi32, #tpu.memory_space<smem>>
    %42 = arith.index_cast %41 : i32 to index
    %c0_13 = arith.constant 0 : index
    %43 = vector.load %arg6[%42, %c0_13] : memref<64x32xf32, #tpu.memory_space<vmem>>, vector<1x32xf32>
    %c6 = arith.constant 6 : index
    %c0_14 = arith.constant 0 : index
    %44 = vector.load %arg8[%c6, %c0_14] : memref<16x32xf32, #tpu.memory_space<vmem>>, vector<1x32xf32>
    tpu.vector_store %arg8[%c6, %c0_14], %43 {strides = array<i32>} : memref<16x32xf32, #tpu.memory_space<vmem>>, vector<1x32xf32>,
    %c7_i32 = arith.constant 7 : i32
    %45 = arith.addi %2, %c7_i32 : i32
    %46 = arith.index_cast %45 : i32 to index
    %47 = memref.load %arg2[%46] : memref<32xi32, #tpu.memory_space<smem>>
    %48 = arith.index_cast %47 : i32 to index
    %c0_15 = arith.constant 0 : index
    %49 = vector.load %arg6[%48, %c0_15] : memref<64x32xf32, #tpu.memory_space<vmem>>, vector<1x32xf32>
    %c7 = arith.constant 7 : index
    %c0_16 = arith.constant 0 : index
    %50 = vector.load %arg8[%c7, %c0_16] : memref<16x32xf32, #tpu.memory_space<vmem>>, vector<1x32xf32>
    tpu.vector_store %arg8[%c7, %c0_16], %49 {strides = array<i32>} : memref<16x32xf32, #tpu.memory_space<vmem>>, vector<1x32xf32>,
    %c8_i32 = arith.constant 8 : i32
    %51 = arith.addi %2, %c8_i32 : i32
    %52 = arith.index_cast %51 : i32 to index
    %53 = memref.load %arg2[%52] : memref<32xi32, #tpu.memory_space<smem>>
    %54 = arith.index_cast %53 : i32 to index
    %c0_17 = arith.constant 0 : index
    %55 = vector.load %arg6[%54, %c0_17] : memref<64x32xf32, #tpu.memory_space<vmem>>, vector<1x32xf32>
    %c8 = arith.constant 8 : index
    %c0_18 = arith.constant 0 : index
    %56 = vector.load %arg8[%c8, %c0_18] : memref<16x32xf32, #tpu.memory_space<vmem>>, vector<1x32xf32>
    tpu.vector_store %arg8[%c8, %c0_18], %55 {strides = array<i32>} : memref<16x32xf32, #tpu.memory_space<vmem>>, vector<1x32xf32>,
    %c9_i32 = arith.constant 9 : i32
    %57 = arith.addi %2, %c9_i32 : i32
    %58 = arith.index_cast %57 : i32 to index
    %59 = memref.load %arg2[%58] : memref<32xi32, #tpu.memory_space<smem>>
    %60 = arith.index_cast %59 : i32 to index
    %c0_19 = arith.constant 0 : index
    %61 = vector.load %arg6[%60, %c0_19] : memref<64x32xf32, #tpu.memory_space<vmem>>, vector<1x32xf32>
    %c9 = arith.constant 9 : index
    %c0_20 = arith.constant 0 : index
    %62 = vector.load %arg8[%c9, %c0_20] : memref<16x32xf32, #tpu.memory_space<vmem>>, vector<1x32xf32>
    tpu.vector_store %arg8[%c9, %c0_20], %61 {strides = array<i32>} : memref<16x32xf32, #tpu.memory_space<vmem>>, vector<1x32xf32>,
    %c10_i32 = arith.constant 10 : i32
    %63 = arith.addi %2, %c10_i32 : i32
    %64 = arith.index_cast %63 : i32 to index
    %65 = memref.load %arg2[%64] : memref<32xi32, #tpu.memory_space<smem>>
    %66 = arith.index_cast %65 : i32 to index
    %c0_21 = arith.constant 0 : index
    %67 = vector.load %arg6[%66, %c0_21] : memref<64x32xf32, #tpu.memory_space<vmem>>, vector<1x32xf32>
    %c10 = arith.constant 10 : index
    %c0_22 = arith.constant 0 : index
    %68 = vector.load %arg8[%c10, %c0_22] : memref<16x32xf32, #tpu.memory_space<vmem>>, vector<1x32xf32>
    tpu.vector_store %arg8[%c10, %c0_22], %67 {strides = array<i32>} : memref<16x32xf32, #tpu.memory_space<vmem>>, vector<1x32xf32>,
    %c11_i32 = arith.constant 11 : i32
    %69 = arith.addi %2, %c11_i32 : i32
    %70 = arith.index_cast %69 : i32 to index
    %71 = memref.load %arg2[%70] : memref<32xi32, #tpu.memory_space<smem>>
    %72 = arith.index_cast %71 : i32 to index
    %c0_23 = arith.constant 0 : index
    %73 = vector.load %arg6[%72, %c0_23] : memref<64x32xf32, #tpu.memory_space<vmem>>, vector<1x32xf32>
    %c11 = arith.constant 11 : index
    %c0_24 = arith.constant 0 : index
    %74 = vector.load %arg8[%c11, %c0_24] : memref<16x32xf32, #tpu.memory_space<vmem>>, vector<1x32xf32>
    tpu.vector_store %arg8[%c11, %c0_24], %73 {strides = array<i32>} : memref<16x32xf32, #tpu.memory_space<vmem>>, vector<1x32xf32>,
    %c12_i32 = arith.constant 12 : i32
    %75 = arith.addi %2, %c12_i32 : i32
    %76 = arith.index_cast %75 : i32 to index
    %77 = memref.load %arg2[%76] : memref<32xi32, #tpu.memory_space<smem>>
    %78 = arith.index_cast %77 : i32 to index
    %c0_25 = arith.constant 0 : index
    %79 = vector.load %arg6[%78, %c0_25] : memref<64x32xf32, #tpu.memory_space<vmem>>, vector<1x32xf32>
    %c12 = arith.constant 12 : index
    %c0_26 = arith.constant 0 : index
    %80 = vector.load %arg8[%c12, %c0_26] : memref<16x32xf32, #tpu.memory_space<vmem>>, vector<1x32xf32>
    tpu.vector_store %arg8[%c12, %c0_26], %79 {strides = array<i32>} : memref<16x32xf32, #tpu.memory_space<vmem>>, vector<1x32xf32>,
    %c13_i32 = arith.constant 13 : i32
    %81 = arith.addi %2, %c13_i32 : i32
    %82 = arith.index_cast %81 : i32 to index
    %83 = memref.load %arg2[%82] : memref<32xi32, #tpu.memory_space<smem>>
    %84 = arith.index_cast %83 : i32 to index
    %c0_27 = arith.constant 0 : index
    %85 = vector.load %arg6[%84, %c0_27] : memref<64x32xf32, #tpu.memory_space<vmem>>, vector<1x32xf32>
    %c13 = arith.constant 13 : index
    %c0_28 = arith.constant 0 : index
    %86 = vector.load %arg8[%c13, %c0_28] : memref<16x32xf32, #tpu.memory_space<vmem>>, vector<1x32xf32>
    tpu.vector_store %arg8[%c13, %c0_28], %85 {strides = array<i32>} : memref<16x32xf32, #tpu.memory_space<vmem>>, vector<1x32xf32>,
    %c14_i32 = arith.constant 14 : i32
    %87 = arith.addi %2, %c14_i32 : i32
    %88 = arith.index_cast %87 : i32 to index
    %89 = memref.load %arg2[%88] : memref<32xi32, #tpu.memory_space<smem>>
    %90 = arith.index_cast %89 : i32 to index
    %c0_29 = arith.constant 0 : index
    %91 = vector.load %arg6[%90, %c0_29] : memref<64x32xf32, #tpu.memory_space<vmem>>, vector<1x32xf32>
    %c14 = arith.constant 14 : index
    %c0_30 = arith.constant 0 : index
    %92 = vector.load %arg8[%c14, %c0_30] : memref<16x32xf32, #tpu.memory_space<vmem>>, vector<1x32xf32>
    tpu.vector_store %arg8[%c14, %c0_30], %91 {strides = array<i32>} : memref<16x32xf32, #tpu.memory_space<vmem>>, vector<1x32xf32>,
    %c15_i32 = arith.constant 15 : i32
    %93 = arith.addi %2, %c15_i32 : i32
    %94 = arith.index_cast %93 : i32 to index
    %95 = memref.load %arg2[%94] : memref<32xi32, #tpu.memory_space<smem>>
    %96 = arith.index_cast %95 : i32 to index
    %c0_31 = arith.constant 0 : index
    %97 = vector.load %arg6[%96, %c0_31] : memref<64x32xf32, #tpu.memory_space<vmem>>, vector<1x32xf32>
    %c15 = arith.constant 15 : index
    %c0_32 = arith.constant 0 : index
    %98 = vector.load %arg8[%c15, %c0_32] : memref<16x32xf32, #tpu.memory_space<vmem>>, vector<1x32xf32>
    tpu.vector_store %arg8[%c15, %c0_32], %97 {strides = array<i32>} : memref<16x32xf32, #tpu.memory_space<vmem>>, vector<1x32xf32>,
    %c16_i32_33 = arith.constant 16 : i32
    %99 = arith.muli %arg1, %c16_i32_33 : i32
    %100 = tpu.assume_multiple %99, 16 : i32
    %c0_34 = arith.constant 0 : index
    %c0_35 = arith.constant 0 : index
    %101 = vector.load %arg8[%c0_34, %c0_35] : memref<16x32xf32, #tpu.memory_space<vmem>>, vector<16x32xf32>
    %102 = arith.index_cast %100 : i32 to index
    %c0_36 = arith.constant 0 : index
    %103 = vector.load %arg3[%102, %c0_36] : memref<16x32xf32, #tpu.memory_space<vmem>>, vector<16x32xf32>
    %104 = arith.addf %101, %103 : vector<16x32xf32>
    %c0_37 = arith.constant 0 : index
    %c0_38 = arith.constant 0 : index
    %105 = vector.load %arg4[%c0_37, %c0_38] : memref<1x32xf32, #tpu.memory_space<vmem>>, vector<1x32xf32>
    %c0_39 = arith.constant 0 : index
    %c0_40 = arith.constant 0 : index
    %106 = vector.load %arg5[%c0_39, %c0_40] : memref<1x32xf32, #tpu.memory_space<vmem>>, vector<1x32xf32>
    %cst = arith.constant dense<0.000000e+00> : vector<16xf32>
    %107 = vector.multi_reduction <add>, %104, %cst [1] : vector<16x32xf32> to vector<16xf32>
    %108 = vector.shape_cast %107 : vector<16xf32> to vector<16x1xf32>
    %cst_41 = arith.constant 3.200000e+01 : f32
    %109 = vector.broadcast %cst_41 : f32 to vector<16x1xf32>
    %110 = arith.divf %108, %109 : vector<16x1xf32>
    %111 = vector.broadcast %110 : vector<16x1xf32> to vector<16x32xf32>
    %112 = arith.subf %104, %111 : vector<16x32xf32>
    %113 = arith.mulf %112, %112 : vector<16x32xf32>
    %cst_42 = arith.constant dense<0.000000e+00> : vector<16xf32>
    %114 = vector.multi_reduction <add>, %113, %cst_42 [1] : vector<16x32xf32> to vector<16xf32>
    %115 = vector.shape_cast %114 : vector<16xf32> to vector<16x1xf32>
    %cst_43 = arith.constant 3.200000e+01 : f32
    %116 = vector.broadcast %cst_43 : f32 to vector<16x1xf32>
    %117 = arith.divf %115, %116 : vector<16x1xf32>
    %cst_44 = arith.constant 9.99999974E-6 : f32
    %118 = vector.broadcast %cst_44 : f32 to vector<16x1xf32>
    %119 = arith.addf %117, %118 : vector<16x1xf32>
    %120 = math.rsqrt %119 : vector<16x1xf32>
    %121 = vector.broadcast %120 : vector<16x1xf32> to vector<16x32xf32>
    %122 = arith.mulf %112, %121 : vector<16x32xf32>
    %123 = vector.broadcast %105 : vector<1x32xf32> to vector<16x32xf32>
    %124 = arith.mulf %122, %123 : vector<16x32xf32>
    %125 = vector.broadcast %106 : vector<1x32xf32> to vector<16x32xf32>
    %126 = arith.addf %124, %125 : vector<16x32xf32>
    %c0_45 = arith.constant 0 : index
    %c0_46 = arith.constant 0 : index
    %127 = vector.load %arg7[%c0_45, %c0_46] : memref<16x32xf32, #tpu.memory_space<vmem>>, vector<16x32xf32>
    tpu.vector_store %arg7[%c0_45, %c0_46], %126 {strides = array<i32>} : memref<16x32xf32, #tpu.memory_space<vmem>>, vector<16x32xf32>,
    return
  }
  func.func @transform_0(%arg0: i32, %arg1: i32, %arg2: memref<32xi32, #tpu.memory_space<smem>>) -> (i32, i32) {
    %c0_i32 = arith.constant 0 : i32
    %c0_i32_0 = arith.constant 0 : i32
    %c0_i32_1 = arith.constant 0 : i32
    return %c0_i32, %c0_i32_0 : i32, i32
  }
  func.func @transform_1(%arg0: i32, %arg1: i32, %arg2: memref<32xi32, #tpu.memory_space<smem>>) -> (i32, i32) {
    %c0_i32 = arith.constant 0 : i32
    %c0_i32_0 = arith.constant 0 : i32
    %c0_i32_1 = arith.constant 0 : i32
    return %c0_i32, %c0_i32_0 : i32, i32
  }
  func.func @transform_2(%arg0: i32, %arg1: i32, %arg2: memref<32xi32, #tpu.memory_space<smem>>) -> (i32, i32) {
    %c0_i32 = arith.constant 0 : i32
    %c0_i32_0 = arith.constant 0 : i32
    %c0_i32_1 = arith.constant 0 : i32
    return %c0_i32, %c0_i32_0 : i32, i32
  }
  func.func @transform_3(%arg0: i32, %arg1: i32, %arg2: memref<32xi32, #tpu.memory_space<smem>>) -> (i32, i32) {
    %c0_i32 = arith.constant 0 : i32
    %c0_i32_0 = arith.constant 0 : i32
    %c0_i32_1 = arith.constant 0 : i32
    return %c0_i32, %c0_i32_0 : i32, i32
  }
  func.func @transform_4(%arg0: i32, %arg1: i32, %arg2: memref<32xi32, #tpu.memory_space<smem>>) -> (i32, i32) {
    %c1_i32 = arith.constant 1 : i32
    %0 = arith.muli %arg0, %c1_i32 : i32
    %1 = arith.addi %0, %arg1 : i32
    %c0_i32 = arith.constant 0 : i32
    %c0_i32_0 = arith.constant 0 : i32
    return %1, %c0_i32 : i32, i32
  }
}

</mosaic_0001>

<llo_original>
// kernel: tpu_custom_call.1
$region0: #{tpu_custom_call.1}
  #allocation0 [shape = 'u32[]', space=smem, size = 0x4, offset = 0x4, fixed_abs, tag = 'smem constant byte address 0x4 - core index']
  #allocation1 [shape = 'u32[144,128]{1,0:T(1,128)}', space=vmem, size = 0x12000, scoped, tag = 'internal scratch']
  #allocation2 [shape = 'f32[16,32]{1,0:T(8,128)}', space=vmem, size = 0x2000, scoped, tag = 'scratch operand']
  #allocation3 [shape = 's32[1]{0}', space=sflag, size = 0x4, scoped, tag = 'scoped memory for tpu_custom_call.1']
  #allocation4 [shape = 'u8[512]{0}', space=smem, size = 0x200, scoped, tag = 'prefetched SMEM operand 0']
  %s0 = inlined_call_operand.vmem [shape: s32[32], index: 0, kind: input, shape index: {}]
  %s1 = inlined_call_operand.vmem [shape: f32[16,32], index: 1, kind: input, shape index: {}]
  %s2 = inlined_call_operand.vmem [shape: f32[1,32], index: 2, kind: input, shape index: {}]
  %s3 = inlined_call_operand.vmem [shape: f32[1,32], index: 3, kind: input, shape index: {}]
  %s4 = inlined_call_operand.vmem [shape: f32[64,32], index: 4, kind: input, shape index: {}]
  %s5 = inlined_call_operand.hbm [shape: f32[32,32], index: 5, kind: output, shape index: {}]
  %s6 = sld [smem:[#allocation0]]
  $region49: #{tpu_custom_call.1} parent=0
    _
  %s8 = ssub.s32 1, %s6
  %s9 = scalar_select 0, %s8, %s6
  %s10 = sshll.u32 %s0, 4
  %s11 = int_to_ptr.vmem [resolvable:$true] %s10
  %13 = dma.vmem_to_smem %s11, 16, [#allocation4], [#allocation3]
  %14 = dma.done [#allocation3], 16
  %15 = sfence
  $region1: #{tpu_custom_call.1} parent=0
    #allocation5 [shape = 'u8[16384]{0}', space=vmem, size = 0x4000, scoped, tag = 'output window, operand 0']
    #allocation6 [shape = 's32[2]{0}', space=sflag, size = 0x8, scoped, tag = 'scoped memory for tpu_custom_call.1']
    %16 = vsyncpa [#allocation6], 0
    %s17 = scalar_lea.sflag [#allocation6], 1
    %18 = vsyncpa %s17, 0
    loop: start=0, step=1, limit=4
    $region2: #{tpu_custom_call.1} parent=1 // loop_pre_header
      _
    $region3: #{tpu_custom_call.1} parent=1 // loop_header
      %s20 = sphi 0, %s24
      %p21 = scmp.ge.s32.totalorder %s20, 4
      %s27 = sphi 0, %s39
      %s28 = sphi 0, %s35
      %s29 = sphi 0, %s27
      %s30 = sphi 0, %s28
      %s31 = sphi 0, %s29
      %s32 = sphi 0, %s30
      %s40 = sphi 0, %s40
      %s42 = sphi 0, %s40
      %s43 = sphi 0, %s42
      %s57 = sphi 0, %s43
      %s61 = sphi 0, %s61
      %s63 = sphi 0, %s61
      %s64 = sphi 0, %s63
      %s78 = sphi 0, %s64
      %s82 = sphi 0, %s82
      %s84 = sphi 0, %s82
      %s85 = sphi 0, %s84
      %s99 = sphi 0, %s85
      %s103 = sphi 0, %s103
      %s105 = sphi 0, %s103
      %s106 = sphi 0, %s105
      %s120 = sphi 0, %s106
      %s128 = sphi 0, %s130
      %s131 = sphi 0, %s128
      %s132 = sphi 0, %s131
      %s148 = sphi 0, %s132
    $region4: #{tpu_custom_call.1} parent=1 // loop_header_branch
      %23 = sbr.rel (%p21) target = $region8
    $region5: #{tpu_custom_call.1} parent=1 // loop_body
      %s25 = ssub.s32 %s20, 1
      %s26 = ssub.s32 %s20, 2
      %s33 = sadd.s32 1, %s28
      %p34 = scmp.ge.s32.totalorder %s33, 1
      %s35 = scalar_select %p34, 0, %s33
      %s36 = sadd.s32 1, %s27
      %s37 = scalar_select %p34, %s36, %s27
      %p38 = scmp.ge.s32.totalorder %s37, 2
      %s39 = scalar_select %p38, 0, %s37
      %s41 = sadd.s32 %s40, 1
      %p44 = scmp.eq.s32.totalorder %s20, 1
      %p45 = scmp.ne.s32.totalorder %s40, %s42
      %p46 = scmp.eq.s32.totalorder %s20, 0
      %p47 = por %p45, %p46
      %p48 = scmp.ne.s32.totalorder %s40, %s42
      %p49 = scmp.eq.s32.totalorder %s25, 1
      %p50 = por %p48, %p49
      %p51 = scmp.ne.s32.totalorder %s42, %s43
      %p52 = scmp.eq.s32.totalorder %s25, 0
      %p53 = por %p51, %p52
      %p54 = scmp.ne.s32.totalorder %s42, %s43
      %p55 = scmp.eq.s32.totalorder %s26, 1
      %p56 = por %p54, %p55
      %p58 = scmp.ne.s32.totalorder %s43, %s57
      %p59 = scmp.eq.s32.totalorder %s26, 0
      %p60 = por %p58, %p59
      %s62 = sadd.s32 %s61, 1
      %p65 = scmp.eq.s32.totalorder %s20, 1
      %p66 = scmp.ne.s32.totalorder %s61, %s63
      %p67 = scmp.eq.s32.totalorder %s20, 0
      %p68 = por %p66, %p67
      %p69 = scmp.ne.s32.totalorder %s61, %s63
      %p70 = scmp.eq.s32.totalorder %s25, 1
      %p71 = por %p69, %p70
      %p72 = scmp.ne.s32.totalorder %s63, %s64
      %p73 = scmp.eq.s32.totalorder %s25, 0
      %p74 = por %p72, %p73
      %p75 = scmp.ne.s32.totalorder %s63, %s64
      %p76 = scmp.eq.s32.totalorder %s26, 1
      %p77 = por %p75, %p76
      %p79 = scmp.ne.s32.totalorder %s64, %s78
      %p80 = scmp.eq.s32.totalorder %s26, 0
      %p81 = por %p79, %p80
      %s83 = sadd.s32 %s82, 1
      %p86 = scmp.eq.s32.totalorder %s20, 1
      %p87 = scmp.ne.s32.totalorder %s82, %s84
      %p88 = scmp.eq.s32.totalorder %s20, 0
      %p89 = por %p87, %p88
      %p90 = scmp.ne.s32.totalorder %s82, %s84
      %p91 = scmp.eq.s32.totalorder %s25, 1
      %p92 = por %p90, %p91
      %p93 = scmp.ne.s32.totalorder %s84, %s85
      %p94 = scmp.eq.s32.totalorder %s25, 0
      %p95 = por %p93, %p94
      %p96 = scmp.ne.s32.totalorder %s84, %s85
      %p97 = scmp.eq.s32.totalorder %s26, 1
      %p98 = por %p96, %p97
      %p100 = scmp.ne.s32.totalorder %s85, %s99
      %p101 = scmp.eq.s32.totalorder %s26, 0
      %p102 = por %p100, %p101
      %s104 = sadd.s32 %s103, 1
      %p107 = scmp.eq.s32.totalorder %s20, 1
      %p108 = scmp.ne.s32.totalorder %s103, %s105
      %p109 = scmp.eq.s32.totalorder %s20, 0
      %p110 = por %p108, %p109
      %p111 = scmp.ne.s32.totalorder %s103, %s105
      %p112 = scmp.eq.s32.totalorder %s25, 1
      %p113 = por %p111, %p112
      %p114 = scmp.ne.s32.totalorder %s105, %s106
      %p115 = scmp.eq.s32.totalorder %s25, 0
      %p116 = por %p114, %p115
      %p117 = scmp.ne.s32.totalorder %s105, %s106
      %p118 = scmp.eq.s32.totalorder %s26, 1
      %p119 = por %p117, %p118
      %p121 = scmp.ne.s32.totalorder %s106, %s120
      %p122 = scmp.eq.s32.totalorder %s26, 0
      %p123 = por %p121, %p122
      %s124 = sadd.s32 %s27, %s28
      %s125 = sadd.s32 %s39, %s35
      %s126 = ssub.s32 %s124, %s125
      %p127 = scmp.eq.s32.totalorder %s126, 0
      %s129 = sadd.s32 %s128, 1
      %s130 = scalar_select %p127, %s128, %s129
      %p133 = pneg %p127
      %p134 = scmp.eq.s32.totalorder %s20, 1
      %p135 = por %p133, %p134
      %p136 = scmp.ne.s32.totalorder %s128, %s131
      %p137 = scmp.eq.s32.totalorder %s20, 0
      %p138 = por %p136, %p137
      %p139 = scmp.ne.s32.totalorder %s128, %s131
      %p140 = scmp.eq.s32.totalorder %s25, 1
      %p141 = por %p139, %p140
      %p142 = scmp.ne.s32.totalorder %s131, %s132
      %p143 = scmp.eq.s32.totalorder %s25, 0
      %p144 = por %p142, %p143
      %p145 = scmp.ne.s32.totalorder %s131, %s132
      %p146 = scmp.eq.s32.totalorder %s26, 1
      %p147 = por %p145, %p146
      %p149 = scmp.ne.s32.totalorder %s132, %s148
      %p150 = scmp.eq.s32.totalorder %s26, 0
      %p151 = por %p149, %p150
      %p152 = scmp.le.s32.totalorder 1, %s20
      %p153 = scmp.lt.s32.totalorder %s20, 3
      %p154 = pnand %p152, %p153
      %p155 = pneg %p154
      // Predicated region
      $region9: #{tpu_custom_call.1} parent=5 // pred_check
        _
      $region10: #{tpu_custom_call.1} parent=5 // pred_check_branch
        %157 = sbr.rel (%p154) target = $region12
      $region11: #{tpu_custom_call.1} parent=5 // pred_region
        %s158 = ssub.s32 %s20, 1
        // Predicated region
        $region13: #{tpu_custom_call.1} parent=11 // pred_check
          %p159 = pneg %p53
        $region14: #{tpu_custom_call.1} parent=11 // pred_check_branch
          %161 = sbr.rel (%p159) target = $region16
        $region15: #{tpu_custom_call.1} parent=11 // pred_region
          _
        $region16: #{tpu_custom_call.1} parent=11 // pred_fallthru
          _
        // Predicated region
        $region17: #{tpu_custom_call.1} parent=11 // pred_check
          %p162 = pneg %p74
        $region18: #{tpu_custom_call.1} parent=11 // pred_check_branch
          %164 = sbr.rel (%p162) target = $region20
        $region19: #{tpu_custom_call.1} parent=11 // pred_region
          _
        $region20: #{tpu_custom_call.1} parent=11 // pred_fallthru
          _
        // Predicated region
        $region21: #{tpu_custom_call.1} parent=11 // pred_check
          %p165 = pneg %p95
        $region22: #{tpu_custom_call.1} parent=11 // pred_check_branch
          %167 = sbr.rel (%p165) target = $region24
        $region23: #{tpu_custom_call.1} parent=11 // pred_region
          _
        $region24: #{tpu_custom_call.1} parent=11 // pred_fallthru
          _
        // Predicated region
        $region25: #{tpu_custom_call.1} parent=11 // pred_check
          %p168 = pneg %p116
        $region26: #{tpu_custom_call.1} parent=11 // pred_check_branch
          %170 = sbr.rel (%p168) target = $region28
        $region27: #{tpu_custom_call.1} parent=11 // pred_region
          _
        $region28: #{tpu_custom_call.1} parent=11 // pred_fallthru
          _
      $region12: #{tpu_custom_call.1} parent=5 // pred_fallthru
        _
      %p171 = scmp.lt.s32.totalorder %s20, 2
      // Predicated region
      $region29: #{tpu_custom_call.1} parent=5 // pred_check
        %p172 = pneg %p171
      $region30: #{tpu_custom_call.1} parent=5 // pred_check_branch
        %174 = sbr.rel (%p172) target = $region32
      $region31: #{tpu_custom_call.1} parent=5 // pred_region
        _
      $region32: #{tpu_custom_call.1} parent=5 // pred_fallthru
        _
      %p175 = scmp.le.s32.totalorder 1, %s20
      %p176 = scmp.lt.s32.totalorder %s20, 3
      %p177 = pnand %p175, %p176
      %p178 = pneg %p177
      // Predicated region
      $region33: #{tpu_custom_call.1} parent=5 // pred_check
        _
      $region34: #{tpu_custom_call.1} parent=5 // pred_check_branch
        %180 = sbr.rel (%p177) target = $region36
      $region35: #{tpu_custom_call.1} parent=5 // pred_region
        %s181 = ssub.s32 %s20, 1
        %p182 = pneg %p53
        %p183 = pneg %p50
        %p184 = pneg %p74
        %p185 = pneg %p71
        %p186 = pneg %p95
        %p187 = pneg %p92
        %p188 = pneg %p116
        %p189 = pneg %p113
        %p190 = pneg %p144
        %p191 = pneg %p141
        %s192 = sand.u32 %s131, 1
        %s193 = scalar_lea.sflag [#allocation6], %s192
        %s194 = sand.u32 %s131, 1
        %s195 = smul.addr %s194, 16
        %s196 = scalar_lea.vmem [#allocation5], %s195
        %s197 = sadd.s32 %s29, %s30
        %s198 = smul.u32 2, %s197
        %s199 = sadd.s32 %s29, %s30
        %s200 = smul.u32 %s199, 16
        %s201 = sld [smem:[#allocation4 + %s200]]
        %s202 = scalar_lea.vmem %s4, %s201
        %v203 = vld [vmem:[%s202] sm:$0x1]
        %vm204 = vcmask 253952
        %205 = vst.msk [vmem:[#allocation2] sm:$0x1] %vm204, %v203
        %s206 = sadd.s32 %s200, 1
        %s207 = sld [smem:[#allocation4 + %s206]]
        %s208 = scalar_lea.vmem %s4, %s207
        %v209 = vld [vmem:[%s208] sm:$0x1]
        %210 = vst.msk [vmem:[#allocation2 + $0x1] sm:$0x1] %vm204, %v209
        %s211 = sadd.s32 %s200, 2
        %s212 = sld [smem:[#allocation4 + %s211]]
        %s213 = scalar_lea.vmem %s4, %s212
        %v214 = vld [vmem:[%s213] sm:$0x1]
        %215 = vst.msk [vmem:[#allocation2 + $0x2] sm:$0x1] %vm204, %v214
        %s216 = sadd.s32 %s200, 3
        %s217 = sld [smem:[#allocation4 + %s216]]
        %s218 = scalar_lea.vmem %s4, %s217
        %v219 = vld [vmem:[%s218] sm:$0x1]
        %220 = vst.msk [vmem:[#allocation2 + $0x3] sm:$0x1] %vm204, %v219
        %s221 = sadd.s32 %s200, 4
        %s222 = sld [smem:[#allocation4 + %s221]]
        %s223 = scalar_lea.vmem %s4, %s222
        %v224 = vld [vmem:[%s223] sm:$0x1]
        %225 = vst.msk [vmem:[#allocation2 + $0x4] sm:$0x1] %vm204, %v224
        %s226 = sadd.s32 %s200, 5
        %s227 = sld [smem:[#allocation4 + %s226]]
        %s228 = scalar_lea.vmem %s4, %s227
        %v229 = vld [vmem:[%s228] sm:$0x1]
        %230 = vst.msk [vmem:[#allocation2 + $0x5] sm:$0x1] %vm204, %v229
        %s231 = sadd.s32 %s200, 6
        %s232 = sld [smem:[#allocation4 + %s231]]
        %s233 = scalar_lea.vmem %s4, %s232
        %v234 = vld [vmem:[%s233] sm:$0x1]
        %235 = vst.msk [vmem:[#allocation2 + $0x6] sm:$0x1] %vm204, %v234
        %s236 = sadd.s32 %s200, 7
        %s237 = sld [smem:[#allocation4 + %s236]]
        %s238 = scalar_lea.vmem %s4, %s237
        %v239 = vld [vmem:[%s238] sm:$0x1]
        %240 = vst.msk [vmem:[#allocation2 + $0x7] sm:$0x1] %vm204, %v239
        %s241 = sadd.s32 %s200, 8
        %s242 = sld [smem:[#allocation4 + %s241]]
        %s243 = scalar_lea.vmem %s4, %s242
        %v244 = vld [vmem:[%s243] sm:$0x1]
        %245 = vst.msk [vmem:[#allocation2 + $0x8] sm:$0x1] %vm204, %v244
        %s246 = sadd.s32 %s200, 9
        %s247 = sld [smem:[#allocation4 + %s246]]
        %s248 = scalar_lea.vmem %s4, %s247
        %v249 = vld [vmem:[%s248] sm:$0x1]
        %250 = vst.msk [vmem:[#allocation2 + $0x9] sm:$0x1] %vm204, %v249
        %s251 = sadd.s32 %s200, 10
        %s252 = sld [smem:[#allocation4 + %s251]]
        %s253 = scalar_lea.vmem %s4, %s252
        %v254 = vld [vmem:[%s253] sm:$0x1]
        %255 = vst.msk [vmem:[#allocation2 + $0xa] sm:$0x1] %vm204, %v254
        %s256 = sadd.s32 %s200, 11
        %s257 = sld [smem:[#allocation4 + %s256]]
        %s258 = scalar_lea.vmem %s4, %s257
        %v259 = vld [vmem:[%s258] sm:$0x1]
        %260 = vst.msk [vmem:[#allocation2 + $0xb] sm:$0x1] %vm204, %v259
        %s261 = sadd.s32 %s200, 12
        %s262 = sld [smem:[#allocation4 + %s261]]
        %s263 = scalar_lea.vmem %s4, %s262
        %v264 = vld [vmem:[%s263] sm:$0x1]
        %265 = vst.msk [vmem:[#allocation2 + $0xc] sm:$0x1] %vm204, %v264
        %s266 = sadd.s32 %s200, 13
        %s267 = sld [smem:[#allocation4 + %s266]]
        %s268 = scalar_lea.vmem %s4, %s267
        %v269 = vld [vmem:[%s268] sm:$0x1]
        %270 = vst.msk [vmem:[#allocation2 + $0xd] sm:$0x1] %vm204, %v269
        %s271 = sadd.s32 %s200, 14
        %s272 = sld [smem:[#allocation4 + %s271]]
        %s273 = scalar_lea.vmem %s4, %s272
        %v274 = vld [vmem:[%s273] sm:$0x1]
        %275 = vst.msk [vmem:[#allocation2 + $0xe] sm:$0x1] %vm204, %v274
        %s276 = sadd.s32 %s200, 15
        %s277 = sld [smem:[#allocation4 + %s276]]
        %s278 = scalar_lea.vmem %s4, %s277
        %v279 = vld [vmem:[%s278] sm:$0x1]
        %280 = vst.msk [vmem:[#allocation2 + $0xf] sm:$0x1] %vm204, %v279
        %s281 = smul.u32 %s30, 16
        %v282 = vld [vmem:[#allocation2] sm:$0xff]
        %v283 = vld [vmem:[#allocation2 + $0x8] sm:$0xff]
        %s284 = scalar_lea.vmem %s1, %s281
        %v285 = vld [vmem:[%s284] sm:$0xff]
        %v286 = vld [vmem:[%s284 + $0x8] sm:$0xff]
        %v287 = vadd.f32 %v282, %v285
        %v288 = vadd.f32 %v283, %v286
        %v289 = vld [vmem:[%s2] sm:$0x1]
        %v290 = vld [vmem:[%s3] sm:$0x1]
        %vm291 = vcmask 261120
        %v292 = vsel %vm291, %v287, 0.0
        %293 = vadd.xlane.f32.xlu0 %v292
        %v294 = vpop.xlane.xlu0 %293
        %v295 = vsel %vm291, %v288, 0.0
        %296 = vadd.xlane.f32.xlu0 %v295
        %v297 = vpop.xlane.xlu0 %296
        %v298 = vrcp.pop 32.0
        %v299 = vmul.f32 %v294, %v298
        %v300 = vmul.f32 %v297, %v298
        %v301 = vsub.f32 %v287, %v299
        %v302 = vsub.f32 %v288, %v300
        %v303 = vmul.f32 %v301, %v301
        %v304 = vmul.f32 %v302, %v302
        %v305 = vsel %vm291, %v303, 0.0
        %306 = vadd.xlane.f32.xlu0 %v305
        %v307 = vpop.xlane.xlu0 %306
        %v308 = vsel %vm291, %v304, 0.0
        %309 = vadd.xlane.f32.xlu0 %v308
        %v310 = vpop.xlane.xlu0 %309
        %v311 = vmul.f32 %v307, %v298
        %v312 = vmul.f32 %v310, %v298
        %v313 = vadd.f32 %v311, 1e-05
        %v314 = vadd.f32 %v312, 1e-05
        %v315 = vrsqrt.pop %v313
        %v316 = vrsqrt.pop %v314
        %v317 = vmul.f32 %v301, %v315
        %v318 = vmul.f32 %v302, %v316
        %v320 = vlaneseq
        %v321 = vshrl.u32 %v320, 7
        %v322 = vsub.s32 0, %v321
        %v323 = vrot.slane %v289, %v322
        %v325 = vmul.f32 %v317, %v323
        %v326 = vmul.f32 %v318, %v323
        %v328 = vlaneseq
        %v329 = vshrl.u32 %v328, 7
        %v330 = vsub.s32 0, %v329
        %v331 = vrot.slane %v290, %v330
        %v333 = vadd.f32 %v325, %v331
        %v334 = vadd.f32 %v326, %v331
        %335 = vst.msk [vmem:[%s196] sm:$0xff] %vm291, %v333
        %336 = vst.msk [vmem:[%s196 + $0x8] sm:$0xff] %vm291, %v334
        %s337 = sand.u32 %s131, 1
        %s338 = scalar_lea.sflag [#allocation6], %s337
        %s339 = sand.u32 %s131, 1
        %s340 = smul.addr %s339, 16
        %s341 = scalar_lea.vmem [#allocation5], %s340
        // Predicated region
        $region37: #{tpu_custom_call.1} parent=35 // pred_check
          %p342 = pneg %p141
        $region38: #{tpu_custom_call.1} parent=35 // pred_check_branch
          %344 = sbr.rel (%p342) target = $region40
        $region39: #{tpu_custom_call.1} parent=35 // pred_region
          %s345 = sadd.s32 %s29, %s30
          %s346 = smul.u32 2, %s345
          %s348 = ssub.s32 256, 256
          %349 = vsyncadd %s338, %s348
          %s350 = smul.addr %s346, 128
          %s351 = scalar_lea.hbm %s5, %s350
          %s352 = sshll.u32 %s341, 4
          %s353 = int_to_ptr.vmem [resolvable:$true] %s352
          %358 = dma.vmem_to_hbm [thread:$0]  %s353, 256, %s351, %s338, 128, 128, 8
        $region40: #{tpu_custom_call.1} parent=35 // pred_fallthru
          _
      $region36: #{tpu_custom_call.1} parent=5 // pred_fallthru
        _
      %p359 = scmp.le.s32.totalorder 2, %s20
      // Predicated region
      $region41: #{tpu_custom_call.1} parent=5 // pred_check
        %p360 = pneg %p359
      $region42: #{tpu_custom_call.1} parent=5 // pred_check_branch
        %362 = sbr.rel (%p360) target = $region44
      $region43: #{tpu_custom_call.1} parent=5 // pred_region
        %s363 = ssub.s32 %s20, 2
        // Predicated region
        $region45: #{tpu_custom_call.1} parent=43 // pred_check
          %p364 = pneg %p147
        $region46: #{tpu_custom_call.1} parent=43 // pred_check_branch
          %366 = sbr.rel (%p364) target = $region48
        $region47: #{tpu_custom_call.1} parent=43 // pred_region
          %s367 = sand.u32 %s132, 1
          %s368 = scalar_lea.sflag [#allocation6], %s367
          %s369 = sand.u32 %s132, 1
          %s370 = smul.addr %s369, 16
          %s371 = scalar_lea.vmem [#allocation5], %s370
          %372 = dma.done %s368, 256
        $region48: #{tpu_custom_call.1} parent=43 // pred_fallthru
          _
      $region44: #{tpu_custom_call.1} parent=5 // pred_fallthru
        _
    $region6: #{tpu_custom_call.1} parent=1 // loop_footer
      %s24 = sadd.s32 1, %s20
    $region7: #{tpu_custom_call.1} parent=1 // loop_footer_branch
      %19 = sbr.rel target = $region3
    $region8: #{tpu_custom_call.1} parent=1 // loop_exit
      _
    %373 = vsyncpa [#allocation6], 1
    %s374 = scalar_lea.sflag [#allocation6], 1
    %375 = vsyncpa %s374, 1

</llo_original>
